<compile_context>
chip_gen: v6e
topology: v6e:2x2x1
jax: 0.10.0
libtpu: 0.0.40
codegen_flags: <defaults>
</compile_context>

<pallas_src>
import jax
import jax.numpy as jnp
from jax.experimental import pallas as pl
from jax.experimental.pallas import tpu as pltpu

NUM_PART = 50
HIDDEN = 128
CLS_PAD = 128          # lane-dense padded class axis
BN_EPS = 1e-5
NEG_INF = -1e30        # bias for padded class columns (kills them in max / LSE)


def _cdiv(a, b):
    return -(-a // b)


def _round_up(x, m):
    return _cdiv(x, m) * m


def _choose_row_tiling(M, tm_max=2048):
    """Pick (tm, M_pad, n_tiles) with bounded padding waste and >=2 grid steps
    for large problems (so v7x's two TensorCores both get work)."""
    n_tiles = _cdiv(M, tm_max)
    if n_tiles == 1 and M > tm_max // 2:
        n_tiles = 2
    # Multiple of 16 (bf16 sublane packing) keeps layouts clean while bounding
    # row-padding waste to <= 15 rows per tile.
    tm = _round_up(_cdiv(M, n_tiles), 16)
    return tm, tm * n_tiles, n_tiles


def classifier_kernel(x_ref, w1_ref, w2_ref, w3_ref, bias_ref, o_ref):
    """One tile of TM points: 3 bf16 matmuls (f32 acc) + ReLU + log-softmax."""
    x = x_ref[...].astype(jnp.bfloat16)  # in-kernel cast (VPU; f32 stays in HBM)
    t1 = bias_ref[0:1, :]                # (1, 128) f32  BN1-folded bias
    t2 = bias_ref[1:2, :]                # (1, 128) f32  BN2-folded bias
    b3 = bias_ref[2:3, :]                # (1, 128) f32  conv3 bias (padded w/ -1e30)

    # --- Conv1d(D_in,128,1) + BN + ReLU (Dropout = identity in eval) ---
    h = jnp.dot(x, w1_ref[...], preferred_element_type=jnp.float32) + t1
    h = jnp.maximum(h, 0.0)

    # --- Conv1d(128,128,1) + BN + ReLU ---
    h = jnp.dot(h.astype(jnp.bfloat16), w2_ref[...],
                preferred_element_type=jnp.float32) + t2
    h = jnp.maximum(h, 0.0)

    # --- Conv1d(128,num_part,1) + LogSoftmax over (padded) class axis ---
    logits = jnp.dot(h.astype(jnp.bfloat16), w3_ref[...],
                     preferred_element_type=jnp.float32) + b3
    m = jnp.max(logits, axis=-1, keepdims=True)          # XLU (unavoidable)
    z = logits - m
    p = jnp.exp(z)                                        # EUP
    # LSE sum offloaded to the (idle) MXU: dot with a ones column instead of a
    # second 128-lane XLU reduction.
    ones_col = jnp.ones((CLS_PAD, 1), jnp.bfloat16)
    ssum = jnp.dot(p.astype(jnp.bfloat16), ones_col,
                   preferred_element_type=jnp.float32)    # (tm, 1) f32
    lse = jnp.log(ssum)
    o_ref[...] = (z - lse).astype(o_ref.dtype)            # bf16 store


def classifier_forward(points, params, *, tm_max=2048):
    """points: (B, N, D_in) float32 -> (B, N, NUM_PART) f32 log-probabilities."""
    B, N, D_in = points.shape
    M = B * N
    tm_eff, M_pad, _ = _choose_row_tiling(M, tm_max)

    x = points.reshape(M, D_in)                          # stays f32; cast in-kernel
    if M_pad > M:
        x = jnp.pad(x, ((0, M_pad - M), (0, 0)))

    # --- Fold eval-mode BatchNorm + conv bias into the matmul weights (glue) ---
    def bn_fold(gamma, beta, mean, var):
        s = gamma / jnp.sqrt(var + BN_EPS)
        t = beta - mean * s
        return s, t

    s1, t1 = bn_fold(params["bn1_gamma"], params["bn1_beta"],
                     params["bn1_mean"], params["bn1_var"])
    s2, t2 = bn_fold(params["bn2_gamma"], params["bn2_beta"],
                     params["bn2_mean"], params["bn2_var"])

    # Conv1d(k=1) weight (C_out, C_in, 1) -> matmul weight (C_in, C_out).
    w1 = params["w1"].reshape(HIDDEN, D_in).T            # (D_in, 128)
    w2 = params["w2"].reshape(HIDDEN, HIDDEN).T          # (128, 128)
    w3 = params["w3"].reshape(NUM_PART, HIDDEN).T        # (128, 50)

    w1f = (w1 * s1[None, :]).astype(jnp.bfloat16)        # BN folded into weights
    w2f = (w2 * s2[None, :]).astype(jnp.bfloat16)
    t1f = params["b1"] * s1 + t1                          # folded biases (f32)
    t2f = params["b2"] * s2 + t2

    # Pad class axis to 128 lanes: zero weight columns, -1e30 bias so padded
    # logits never affect max / logsumexp.
    w3p = jnp.zeros((HIDDEN, CLS_PAD), jnp.float32).at[:, :NUM_PART].set(w3)
    w3p = w3p.astype(jnp.bfloat16)
    b3p = jnp.full((CLS_PAD,), NEG_INF, jnp.float32).at[:NUM_PART].set(params["b3"])

    # Pack the three per-channel vectors into one (3, 128) operand.
    bias_pack = jnp.stack([t1f, t2f, b3p], axis=0)        # (3, 128) f32

    full = lambda arr: pl.BlockSpec(arr.shape, lambda i: (0, 0))
    grid = (M_pad // tm_eff,)

    out = pl.pallas_call(
        classifier_kernel,
        out_shape=jax.ShapeDtypeStruct((M_pad, CLS_PAD), jnp.bfloat16),
        grid_spec=pltpu.PrefetchScalarGridSpec(
            num_scalar_prefetch=0,
            grid=grid,
            in_specs=[
                pl.BlockSpec((tm_eff, D_in), lambda i: (i, 0)),   # x tile (f32)
                full(w1f), full(w2f), full(w3p), full(bias_pack),
            ],
            out_specs=pl.BlockSpec((tm_eff, CLS_PAD), lambda i: (i, 0)),
        ),
        compiler_params=pltpu.CompilerParams(
            dimension_semantics=("parallel",),
            vmem_limit_bytes=32 * 1024 * 1024),   # v5e scoped default is only 16 MiB
    )(x, w1f, w2f, w3p, bias_pack)

    # Drop row padding and padded class lanes; upcast to f32 in the same pass.
    return out[:M, :NUM_PART].astype(jnp.float32).reshape(B, N, NUM_PART)


def init_params(key, d_in):
    """Deterministic synthetic parameters matching the PyTorch module shapes."""
    ks = jax.random.split(key, 12)
    return {
        # Conv1d weights: (C_out, C_in, 1)
        "w1": 0.1 * jax.random.normal(ks[0], (HIDDEN, d_in, 1), jnp.float32),
        "b1": 0.01 * jax.random.normal(ks[1], (HIDDEN,), jnp.float32),
        "w2": 0.1 * jax.random.normal(ks[2], (HIDDEN, HIDDEN, 1), jnp.float32),
        "b2": 0.01 * jax.random.normal(ks[3], (HIDDEN,), jnp.float32),
        "w3": 0.1 * jax.random.normal(ks[4], (NUM_PART, HIDDEN, 1), jnp.float32),
        "b3": 0.01 * jax.random.normal(ks[5], (NUM_PART,), jnp.float32),
        # BatchNorm1d(128) affine params + running stats (eval mode).
        "bn1_gamma": 1.0 + 0.05 * jax.random.normal(ks[6], (HIDDEN,), jnp.float32),
        "bn1_beta": 0.05 * jax.random.normal(ks[7], (HIDDEN,), jnp.float32),
        "bn1_mean": 0.05 * jax.random.normal(ks[8], (HIDDEN,), jnp.float32),
        "bn1_var": 1.0 + 0.1 * jax.nn.softplus(
            jax.random.normal(ks[9], (HIDDEN,), jnp.float32)),
        "bn2_gamma": 1.0 + 0.05 * jax.random.normal(ks[10], (HIDDEN,), jnp.float32),
        "bn2_beta": 0.05 * jax.random.normal(ks[11], (HIDDEN,), jnp.float32),
        "bn2_mean": jnp.zeros((HIDDEN,), jnp.float32),
        "bn2_var": jnp.ones((HIDDEN,), jnp.float32),
    }


def reference_forward(points, params):
    """Pure-JAX f32 reference mirroring the PyTorch eval forward."""
    B, N, D_in = points.shape
    x = points.reshape(B * N, D_in)
    w1 = params["w1"].reshape(HIDDEN, D_in).T
    w2 = params["w2"].reshape(HIDDEN, HIDDEN).T
    w3 = params["w3"].reshape(NUM_PART, HIDDEN).T
    h = x @ w1 + params["b1"]
    h = (h - params["bn1_mean"]) / jnp.sqrt(params["bn1_var"] + BN_EPS)
    h = h * params["bn1_gamma"] + params["bn1_beta"]
    h = jnp.maximum(h, 0.0)
    h = h @ w2 + params["b2"]
    h = (h - params["bn2_mean"]) / jnp.sqrt(params["bn2_var"] + BN_EPS)
    h = h * params["bn2_gamma"] + params["bn2_beta"]
    h = jnp.maximum(h, 0.0)
    logits = h @ w3 + params["b3"]
    return jax.nn.log_softmax(logits, axis=-1).reshape(B, N, NUM_PART)


if __name__ == "__main__":
    # TODO(synk): training-mode Dropout / batch-stat BN not implemented (eval semantics only).
    B, N, D_IN = 2, 64, 16   # B*N = 128 points (tile auto-capped to the problem size)
    key = jax.random.PRNGKey(0)
    k_pts, k_par = jax.random.split(key)
    points = jax.random.normal(k_pts, (B, N, D_IN), jnp.float32)
    params = init_params(k_par, D_IN)

    out = classifier_forward(points, params)
    out = jax.block_until_ready(out)

    ref = reference_forward(points, params)
    assert out.shape == (B, N, NUM_PART)
    assert out.dtype == jnp.float32
    # bf16 matmul operands / bf16 output store (f32 accumulation) -> loose
    # tolerance vs the pure-f32 reference.
    assert jnp.max(jnp.abs(out - ref)) < 1.5e-1
    print("KERNEL_OK")
</pallas_src>

<mosaic_0001>
module attributes {stable_mosaic.version = 11 : i64} {
  func.func @classifier_kernel(%arg0: i32, %arg1: memref<128x16xf32, #tpu.memory_space<vmem>>, %arg2: memref<16x128xbf16, #tpu.memory_space<vmem>>, %arg3: memref<128x128xbf16, #tpu.memory_space<vmem>>, %arg4: memref<128x128xbf16, #tpu.memory_space<vmem>>, %arg5: memref<3x128xf32, #tpu.memory_space<vmem>>, %arg6: memref<128x128xbf16, #tpu.memory_space<vmem>>) attributes {dimension_semantics = [#tpu.dimension_semantics<parallel>], iteration_bounds = array<i64: 1>, scalar_prefetch = 0 : i64, scratch_operands = 0 : i64, tpu.core_type = #tpu.core_type<tc>, window_params = [{transform_indices = @transform_0, window_bounds = array<i64: 128, 16>}, {pipeline_mode = #tpu.pipeline_mode<synchronous>, transform_indices = @transform_1, window_bounds = array<i64: 16, 128>}, {pipeline_mode = #tpu.pipeline_mode<synchronous>, transform_indices = @transform_2, window_bounds = array<i64: 128, 128>}, {pipeline_mode = #tpu.pipeline_mode<synchronous>, transform_indices = @transform_3, window_bounds = array<i64: 128, 128>}, {pipeline_mode = #tpu.pipeline_mode<synchronous>, transform_indices = @transform_4, window_bounds = array<i64: 3, 128>}, {transform_indices = @transform_5, window_bounds = array<i64: 128, 128>}]} {
    %c0 = arith.constant 0 : index
    %c0_0 = arith.constant 0 : index
    %0 = vector.load %arg1[%c0, %c0_0] : memref<128x16xf32, #tpu.memory_space<vmem>>, vector<128x16xf32>
    %1 = arith.truncf %0 : vector<128x16xf32> to vector<128x16xbf16>
    %c0_1 = arith.constant 0 : index
    %c0_2 = arith.constant 0 : index
    %2 = vector.load %arg5[%c0_1, %c0_2] : memref<3x128xf32, #tpu.memory_space<vmem>>, vector<1x128xf32>
    %c1 = arith.constant 1 : index
    %c0_3 = arith.constant 0 : index
    %3 = vector.load %arg5[%c1, %c0_3] : memref<3x128xf32, #tpu.memory_space<vmem>>, vector<1x128xf32>
    %c2 = arith.constant 2 : index
    %c0_4 = arith.constant 0 : index
    %4 = vector.load %arg5[%c2, %c0_4] : memref<3x128xf32, #tpu.memory_space<vmem>>, vector<1x128xf32>
    %c0_5 = arith.constant 0 : index
    %c0_6 = arith.constant 0 : index
    %5 = vector.load %arg2[%c0_5, %c0_6] : memref<16x128xbf16, #tpu.memory_space<vmem>>, vector<16x128xbf16>
    %cst = arith.constant dense<0.000000e+00> : vector<128x128xf32>
    %6 = tpu.matmul %1, %5, %cst {dimension_numbers = #tpu.dot_dimension_numbers<[1], [0], [0], [1], [0, 0, 1, 1], [], []>} : vector<128x16xbf16>, vector<16x128xbf16>, vector<128x128xf32> -> vector<128x128xf32>
    %7 = vector.broadcast %2 : vector<1x128xf32> to vector<128x128xf32>
    %8 = arith.addf %6, %7 : vector<128x128xf32>
    %cst_7 = arith.constant 0.000000e+00 : f32
    %9 = vector.broadcast %cst_7 : f32 to vector<128x128xf32>
    %10 = arith.maximumf %8, %9 : vector<128x128xf32>
    %11 = arith.truncf %10 : vector<128x128xf32> to vector<128x128xbf16>
    %c0_8 = arith.constant 0 : index
    %c0_9 = arith.constant 0 : index
    %12 = vector.load %arg3[%c0_8, %c0_9] : memref<128x128xbf16, #tpu.memory_space<vmem>>, vector<128x128xbf16>
    %cst_10 = arith.constant dense<0.000000e+00> : vector<128x128xf32>
    %13 = tpu.matmul %11, %12, %cst_10 {dimension_numbers = #tpu.dot_dimension_numbers<[1], [0], [0], [1], [0, 0, 1, 1], [], []>} : vector<128x128xbf16>, vector<128x128xbf16>, vector<128x128xf32> -> vector<128x128xf32>
    %14 = vector.broadcast %3 : vector<1x128xf32> to vector<128x128xf32>
    %15 = arith.addf %13, %14 : vector<128x128xf32>
    %cst_11 = arith.constant 0.000000e+00 : f32
    %16 = vector.broadcast %cst_11 : f32 to vector<128x128xf32>
    %17 = arith.maximumf %15, %16 : vector<128x128xf32>
    %18 = arith.truncf %17 : vector<128x128xf32> to vector<128x128xbf16>
    %c0_12 = arith.constant 0 : index
    %c0_13 = arith.constant 0 : index
    %19 = vector.load %arg4[%c0_12, %c0_13] : memref<128x128xbf16, #tpu.memory_space<vmem>>, vector<128x128xbf16>
    %cst_14 = arith.constant dense<0.000000e+00> : vector<128x128xf32>
    %20 = tpu.matmul %18, %19, %cst_14 {dimension_numbers = #tpu.dot_dimension_numbers<[1], [0], [0], [1], [0, 0, 1, 1], [], []>} : vector<128x128xbf16>, vector<128x128xbf16>, vector<128x128xf32> -> vector<128x128xf32>
    %21 = vector.broadcast %4 : vector<1x128xf32> to vector<128x128xf32>
    %22 = arith.addf %20, %21 : vector<128x128xf32>
    %cst_15 = arith.constant dense<0xFF800000> : vector<128xf32>
    %23 = vector.multi_reduction <maximumf>, %22, %cst_15 [1] : vector<128x128xf32> to vector<128xf32>
    %24 = vector.shape_cast %23 : vector<128xf32> to vector<128x1xf32>
    %25 = vector.broadcast %24 : vector<128x1xf32> to vector<128x128xf32>
    %26 = arith.subf %22, %25 : vector<128x128xf32>
    %27 = math.exp %26 : vector<128x128xf32>
    %cst_16 = arith.constant 1.000000e+00 : bf16
    %28 = vector.broadcast %cst_16 : bf16 to vector<128x1xbf16>
    %29 = arith.truncf %27 : vector<128x128xf32> to vector<128x128xbf16>
    %cst_17 = arith.constant dense<0.000000e+00> : vector<128x1xf32>
    %30 = tpu.matmul %29, %28, %cst_17 {dimension_numbers = #tpu.dot_dimension_numbers<[1], [0], [0], [1], [0, 0, 1, 1], [], []>} : vector<128x128xbf16>, vector<128x1xbf16>, vector<128x1xf32> -> vector<128x1xf32>
    %31 = math.log %30 : vector<128x1xf32>
    %32 = vector.broadcast %31 : vector<128x1xf32> to vector<128x128xf32>
    %33 = arith.subf %26, %32 : vector<128x128xf32>
    %34 = arith.truncf %33 : vector<128x128xf32> to vector<128x128xbf16>
    %c0_18 = arith.constant 0 : index
    %c0_19 = arith.constant 0 : index
    %35 = vector.load %arg6[%c0_18, %c0_19] : memref<128x128xbf16, #tpu.memory_space<vmem>>, vector<128x128xbf16>
    tpu.vector_store %arg6[%c0_18, %c0_19], %34 {strides = array<i32>} : memref<128x128xbf16, #tpu.memory_space<vmem>>, vector<128x128xbf16>,
    return
  }
  func.func @transform_0(%arg0: i32) -> (i32, i32) {
    %c0_i32 = arith.constant 0 : i32
    %c0_i32_0 = arith.constant 0 : i32
    return %arg0, %c0_i32 : i32, i32
  }
  func.func @transform_1(%arg0: i32) -> (i32, i32) {
    %c0_i32 = arith.constant 0 : i32
    %c0_i32_0 = arith.constant 0 : i32
    %c0_i32_1 = arith.constant 0 : i32
    return %c0_i32, %c0_i32_0 : i32, i32
  }
  func.func @transform_2(%arg0: i32) -> (i32, i32) {
    %c0_i32 = arith.constant 0 : i32
    %c0_i32_0 = arith.constant 0 : i32
    %c0_i32_1 = arith.constant 0 : i32
    return %c0_i32, %c0_i32_0 : i32, i32
  }
  func.func @transform_3(%arg0: i32) -> (i32, i32) {
    %c0_i32 = arith.constant 0 : i32
    %c0_i32_0 = arith.constant 0 : i32
    %c0_i32_1 = arith.constant 0 : i32
    return %c0_i32, %c0_i32_0 : i32, i32
  }
  func.func @transform_4(%arg0: i32) -> (i32, i32) {
    %c0_i32 = arith.constant 0 : i32
    %c0_i32_0 = arith.constant 0 : i32
    %c0_i32_1 = arith.constant 0 : i32
    return %c0_i32, %c0_i32_0 : i32, i32
  }
  func.func @transform_5(%arg0: i32) -> (i32, i32) {
    %c0_i32 = arith.constant 0 : i32
    %c0_i32_0 = arith.constant 0 : i32
    return %arg0, %c0_i32 : i32, i32
  }
}

</mosaic_0001>

<llo_original>
// kernel: tpu_custom_call.1
$region0: #{tpu_custom_call.1}
  #allocation0 [shape = 'u32[]', space=smem, size = 0x4, offset = 0x4, fixed_abs, tag = 'smem constant byte address 0x4 - core index']
  #allocation1 [shape = 'u32[144,128]{1,0:T(1,128)}', space=vmem, size = 0x12000, scoped, tag = 'internal scratch']
  %s0 = inlined_call_operand.vmem [shape: f32[128,16], index: 0, kind: input, shape index: {}]
  %s1 = inlined_call_operand.vmem [shape: bf16[16,128], index: 1, kind: input, shape index: {}]
  %s2 = inlined_call_operand.vmem [shape: bf16[128,128], index: 2, kind: input, shape index: {}]
  %s3 = inlined_call_operand.vmem [shape: bf16[128,128], index: 3, kind: input, shape index: {}]
  %s4 = inlined_call_operand.vmem [shape: f32[3,128], index: 4, kind: input, shape index: {}]
  %s5 = inlined_call_operand.hbm [shape: bf16[128,128], index: 5, kind: output, shape index: {}]
  %s6 = sld [smem:[#allocation0]]
  $region30: #{tpu_custom_call.1} parent=0
    _
  %s8 = ssub.s32 1, %s6
  %s9 = scalar_select 0, %s8, %s6
  $region1: #{tpu_custom_call.1} parent=0
    #allocation2 [shape = 'u8[32768]{0}', space=vmem, size = 0x8000, scoped, tag = 'output window, operand 0, single buffered']
    #allocation3 [shape = 's32[1]{0}', space=sflag, size = 0x4, scoped, tag = 'scoped memory for tpu_custom_call.1']
    %10 = vsyncpa [#allocation3], 0
    // Predicated region
    $region2: #{tpu_custom_call.1} parent=1 // pred_check
      _
    $region3: #{tpu_custom_call.1} parent=1 // pred_check_branch
      %12 = sbr.rel (0) target = $region5
    $region4: #{tpu_custom_call.1} parent=1 // pred_region
      _
    $region5: #{tpu_custom_call.1} parent=1 // pred_fallthru
      _
    // Predicated region
    $region6: #{tpu_custom_call.1} parent=1 // pred_check
      _
    $region7: #{tpu_custom_call.1} parent=1 // pred_check_branch
      %14 = sbr.rel (0) target = $region9
    $region8: #{tpu_custom_call.1} parent=1 // pred_region
      _
    $region9: #{tpu_custom_call.1} parent=1 // pred_fallthru
      _
    // Predicated region
    $region10: #{tpu_custom_call.1} parent=1 // pred_check
      _
    $region11: #{tpu_custom_call.1} parent=1 // pred_check_branch
      %16 = sbr.rel (0) target = $region13
    $region12: #{tpu_custom_call.1} parent=1 // pred_region
      _
    $region13: #{tpu_custom_call.1} parent=1 // pred_fallthru
      _
    // Predicated region
    $region14: #{tpu_custom_call.1} parent=1 // pred_check
      _
    $region15: #{tpu_custom_call.1} parent=1 // pred_check_branch
      %18 = sbr.rel (0) target = $region17
    $region16: #{tpu_custom_call.1} parent=1 // pred_region
      _
    $region17: #{tpu_custom_call.1} parent=1 // pred_fallthru
      _
    // Predicated region
    $region18: #{tpu_custom_call.1} parent=1 // pred_check
      _
    $region19: #{tpu_custom_call.1} parent=1 // pred_check_branch
      %20 = sbr.rel (0) target = $region21
    $region20: #{tpu_custom_call.1} parent=1 // pred_region
      _
    $region21: #{tpu_custom_call.1} parent=1 // pred_fallthru
      _
    %v23 = vld [vmem:[%s0] sm:$0xff]
    %v24 = vld [vmem:[%s0 + $0x8] sm:$0xff]
    %v25 = vld [vmem:[%s0 + $0x10] sm:$0xff]
    %v26 = vld [vmem:[%s0 + $0x18] sm:$0xff]
    %v27 = vld [vmem:[%s0 + $0x20] sm:$0xff]
    %v28 = vld [vmem:[%s0 + $0x28] sm:$0xff]
    %v29 = vld [vmem:[%s0 + $0x30] sm:$0xff]
    %v30 = vld [vmem:[%s0 + $0x38] sm:$0xff]
    %v31 = vld [vmem:[%s0 + $0x40] sm:$0xff]
    %v32 = vld [vmem:[%s0 + $0x48] sm:$0xff]
    %v33 = vld [vmem:[%s0 + $0x50] sm:$0xff]
    %v34 = vld [vmem:[%s0 + $0x58] sm:$0xff]
    %v35 = vld [vmem:[%s0 + $0x60] sm:$0xff]
    %v36 = vld [vmem:[%s0 + $0x68] sm:$0xff]
    %v37 = vld [vmem:[%s0 + $0x70] sm:$0xff]
    %v38 = vld [vmem:[%s0 + $0x78] sm:$0xff]
    %v39 = vpack.c.bf16 %v24, %v23
    %v40 = vpack.c.bf16 %v26, %v25
    %v41 = vpack.c.bf16 %v28, %v27
    %v42 = vpack.c.bf16 %v30, %v29
    %v43 = vpack.c.bf16 %v32, %v31
    %v44 = vpack.c.bf16 %v34, %v33
    %v45 = vpack.c.bf16 %v36, %v35
    %v46 = vpack.c.bf16 %v38, %v37
    %v47 = vld [vmem:[%s4] sm:$0x1]
    %v48 = vld [vmem:[%s4 + $0x1] sm:$0x1]
    %v49 = vld [vmem:[%s4 + $0x2] sm:$0x1]
    %v50 = vld [vmem:[%s1] sm:$0xf]
    %v51 = vld [vmem:[%s1 + $0x4] sm:$0xf]
    %v52 = vlaneseq
    %v53 = vshrl.u32 %v52, 7
    %v54 = vsub.s32 0, %v53
    %v55 = vrot.slane %v47, %v54
    %v58 = vunpack.c.l.b16 %v50
    %v59 = vunpack.c.l.b16 %v51
    %v60 = vpack.c.b16 %v59, %v58
    %vm62 = vcmask 130048
    %v64 = vsel %vm62, %v39, 0
    %v67 = vsel %vm62, %v40, 0
    %v70 = vsel %vm62, %v41, 0
    %v73 = vsel %vm62, %v42, 0
    %v76 = vsel %vm62, %v43, 0
    %v79 = vsel %vm62, %v44, 0
    %v82 = vsel %vm62, %v45, 0
    %v85 = vsel %vm62, %v46, 0
    %87 = vmatprep.subr.bf16.mxu0 0
    %88 = vmatpush1.bf16.msra.mxu0 0
    %89 = vmatprep.subr.bf16.mxu0 0
    %90 = vmatpush1.bf16.msra.mxu0 0
    %91 = vmatprep.subr.bf16.mxu0 0
    %92 = vmatpush1.bf16.msra.mxu0 0
    %93 = vmatprep.subr.bf16.mxu0 0
    %94 = vmatpush1.bf16.msra.mxu0 0
    %95 = vmatprep.subr.bf16.mxu0 0
    %96 = vmatpush1.bf16.msra.mxu0 0
    %97 = vmatprep.subr.bf16.mxu0 0
    %98 = vmatpush1.bf16.msra.mxu0 0
    %99 = vmatprep.subr.bf16.mxu0 0
    %100 = vmatpush1.bf16.msra.mxu0 0
    %101 = vmatprep.subr.bf16.mxu0 0
    %102 = vmatpush1.bf16.msra.mxu0 %v60
    %103 = vmatprep.subr.bf16.mxu0 0
    %104 = vmatpush2.bf16.msra.mxu0 0
    %105 = vmatprep.subr.bf16.mxu0 0
    %106 = vmatpush2.bf16.msra.mxu0 0
    %107 = vmatprep.subr.bf16.mxu0 0
    %108 = vmatpush2.bf16.msra.mxu0 0
    %109 = vmatprep.subr.bf16.mxu0 0
    %110 = vmatpush2.bf16.msra.mxu0 0
    %111 = vmatprep.subr.bf16.mxu0 0
    %112 = vmatpush2.bf16.msra.mxu0 0
    %113 = vmatprep.subr.bf16.mxu0 0
    %114 = vmatpush2.bf16.msra.mxu0 0
    %115 = vmatprep.subr.bf16.mxu0 0
    %116 = vmatpush2.bf16.msra.mxu0 0
    %117 = vmatprep.subr.bf16.mxu0 0
    %118 = vmatpush2.bf16.msra.mxu0 0
    %119 = vmatprep.mubr.bf16.mxu0 0
    %120 = vmatmul.mubr.bf16.gmra.mxu0 %v64
    %v121 = vpop.f32.mrf.mxu0
    %v122 = vadd.f32 %v55, %v121
    %v123 = vpop.f32.mrf.mxu0
    %v124 = vpop.f32.mrf.mxu0
    %v125 = vadd.f32 %v55, %v124
    %v126 = vpop.f32.mrf.mxu0
    %127 = vmatprep.mubr.bf16.mxu0 0
    %128 = vmatmul.mubr.bf16.gmra.mxu0 %v67
    %v129 = vpop.f32.mrf.mxu0
    %v130 = vadd.f32 %v55, %v129
    %v131 = vpop.f32.mrf.mxu0
    %v132 = vpop.f32.mrf.mxu0
    %v133 = vadd.f32 %v55, %v132
    %v134 = vpop.f32.mrf.mxu0
    %135 = vmatprep.mubr.bf16.mxu0 0
    %136 = vmatmul.mubr.bf16.gmra.mxu0 %v70
    %v137 = vpop.f32.mrf.mxu0
    %v138 = vadd.f32 %v55, %v137
    %v139 = vpop.f32.mrf.mxu0
    %v140 = vpop.f32.mrf.mxu0
    %v141 = vadd.f32 %v55, %v140
    %v142 = vpop.f32.mrf.mxu0
    %143 = vmatprep.mubr.bf16.mxu0 0
    %144 = vmatmul.mubr.bf16.gmra.mxu0 %v73
    %v145 = vpop.f32.mrf.mxu0
    %v146 = vadd.f32 %v55, %v145
    %v147 = vpop.f32.mrf.mxu0
    %v148 = vpop.f32.mrf.mxu0
    %v149 = vadd.f32 %v55, %v148
    %v150 = vpop.f32.mrf.mxu0
    %151 = vmatprep.mubr.bf16.mxu0 0
    %152 = vmatmul.mubr.bf16.gmra.mxu0 %v76
    %v153 = vpop.f32.mrf.mxu0
    %v154 = vadd.f32 %v55, %v153
    %v155 = vpop.f32.mrf.mxu0
    %v156 = vpop.f32.mrf.mxu0
    %v157 = vadd.f32 %v55, %v156
    %v158 = vpop.f32.mrf.mxu0
    %159 = vmatprep.mubr.bf16.mxu0 0
    %160 = vmatmul.mubr.bf16.gmra.mxu0 %v79
    %v161 = vpop.f32.mrf.mxu0
    %v162 = vadd.f32 %v55, %v161
    %v163 = vpop.f32.mrf.mxu0
    %v164 = vpop.f32.mrf.mxu0
    %v165 = vadd.f32 %v55, %v164
    %v166 = vpop.f32.mrf.mxu0
    %167 = vmatprep.mubr.bf16.mxu0 0
    %168 = vmatmul.mubr.bf16.gmra.mxu0 %v82
    %v169 = vpop.f32.mrf.mxu0
    %v170 = vadd.f32 %v55, %v169
    %v171 = vpop.f32.mrf.mxu0
    %v172 = vpop.f32.mrf.mxu0
    %v173 = vadd.f32 %v55, %v172
    %v174 = vpop.f32.mrf.mxu0
    %175 = vmatprep.mubr.bf16.mxu0 0
    %176 = vmatmul.mubr.bf16.gmra.mxu0 %v85
    %v177 = vpop.f32.mrf.mxu0
    %v178 = vadd.f32 %v55, %v177
    %v179 = vpop.f32.mrf.mxu0
    %v180 = vpop.f32.mrf.mxu0
    %v181 = vadd.f32 %v55, %v180
    %v182 = vpop.f32.mrf.mxu0
    %183 = vdwg.mxu0
    %v184 = vmax.f32 %v122, 0.0
    %v185 = vmax.f32 %v125, 0.0
    %v186 = vmax.f32 %v130, 0.0
    %v187 = vmax.f32 %v133, 0.0
    %v188 = vmax.f32 %v138, 0.0
    %v189 = vmax.f32 %v141, 0.0
    %v190 = vmax.f32 %v146, 0.0
    %v191 = vmax.f32 %v149, 0.0
    %v192 = vmax.f32 %v154, 0.0
    %v193 = vmax.f32 %v157, 0.0
    %v194 = vmax.f32 %v162, 0.0
    %v195 = vmax.f32 %v165, 0.0
    %v196 = vmax.f32 %v170, 0.0
    %v197 = vmax.f32 %v173, 0.0
    %v198 = vmax.f32 %v178, 0.0
    %v199 = vmax.f32 %v181, 0.0
    %v200 = vpack.c.bf16 %v185, %v184
    %v201 = vpack.c.bf16 %v187, %v186
    %v202 = vpack.c.bf16 %v189, %v188
    %v203 = vpack.c.bf16 %v191, %v190
    %v204 = vpack.c.bf16 %v193, %v192
    %v205 = vpack.c.bf16 %v195, %v194
    %v206 = vpack.c.bf16 %v197, %v196
    %v207 = vpack.c.bf16 %v199, %v198
    %v208 = vld [vmem:[%s2] sm:$0xf]
    %v209 = vld [vmem:[%s2 + $0x4] sm:$0xf]
    %v210 = vld [vmem:[%s2 + $0x8] sm:$0xf]
    %v211 = vld [vmem:[%s2 + $0xc] sm:$0xf]
    %v212 = vld [vmem:[%s2 + $0x10] sm:$0xf]
    %v213 = vld [vmem:[%s2 + $0x14] sm:$0xf]
    %v214 = vld [vmem:[%s2 + $0x18] sm:$0xf]
    %v215 = vld [vmem:[%s2 + $0x1c] sm:$0xf]
    %v216 = vld [vmem:[%s2 + $0x20] sm:$0xf]
    %v217 = vld [vmem:[%s2 + $0x24] sm:$0xf]
    %v218 = vld [vmem:[%s2 + $0x28] sm:$0xf]
    %v219 = vld [vmem:[%s2 + $0x2c] sm:$0xf]
    %v220 = vld [vmem:[%s2 + $0x30] sm:$0xf]
    %v221 = vld [vmem:[%s2 + $0x34] sm:$0xf]
    %v222 = vld [vmem:[%s2 + $0x38] sm:$0xf]
    %v223 = vld [vmem:[%s2 + $0x3c] sm:$0xf]
    %v224 = vlaneseq
    %v225 = vshrl.u32 %v224, 7
    %v226 = vsub.s32 0, %v225
    %v227 = vrot.slane %v48, %v226
    %v244 = vunpack.c.l.b16 %v208
    %v245 = vunpack.c.l.b16 %v209
    %v246 = vunpack.c.l.b16 %v210
    %v247 = vunpack.c.l.b16 %v211
    %v248 = vunpack.c.l.b16 %v212
    %v249 = vunpack.c.l.b16 %v213
    %v250 = vunpack.c.l.b16 %v214
    %v251 = vunpack.c.l.b16 %v215
    %v252 = vunpack.c.l.b16 %v216
    %v253 = vunpack.c.l.b16 %v217
    %v254 = vunpack.c.l.b16 %v218
    %v255 = vunpack.c.l.b16 %v219
    %v256 = vunpack.c.l.b16 %v220
    %v257 = vunpack.c.l.b16 %v221
    %v258 = vunpack.c.l.b16 %v222
    %v259 = vunpack.c.l.b16 %v223
    %v260 = vpack.c.b16 %v245, %v244
    %v261 = vpack.c.b16 %v247, %v246
    %v262 = vpack.c.b16 %v249, %v248
    %v263 = vpack.c.b16 %v251, %v250
    %v264 = vpack.c.b16 %v253, %v252
    %v265 = vpack.c.b16 %v255, %v254
    %v266 = vpack.c.b16 %v257, %v256
    %v267 = vpack.c.b16 %v259, %v258
    %276 = vmatprep.subr.bf16.mxu0 0
    %277 = vmatpush1.bf16.msra.mxu0 %v267
    %278 = vmatprep.subr.bf16.mxu0 0
    %279 = vmatpush1.bf16.msra.mxu0 %v266
    %280 = vmatprep.subr.bf16.mxu0 0
    %281 = vmatpush1.bf16.msra.mxu0 %v265
    %282 = vmatprep.subr.bf16.mxu0 0
    %283 = vmatpush1.bf16.msra.mxu0 %v264
    %284 = vmatprep.subr.bf16.mxu0 0
    %285 = vmatpush1.bf16.msra.mxu0 %v263
    %286 = vmatprep.subr.bf16.mxu0 0
    %287 = vmatpush1.bf16.msra.mxu0 %v262
    %288 = vmatprep.subr.bf16.mxu0 0
    %289 = vmatpush1.bf16.msra.mxu0 %v261
    %290 = vmatprep.subr.bf16.mxu0 0
    %291 = vmatpush1.bf16.msra.mxu0 %v260
    %292 = vmatprep.subr.bf16.mxu0 0
    %293 = vmatpush2.bf16.msra.mxu0 0
    %294 = vmatprep.subr.bf16.mxu0 0
    %295 = vmatpush2.bf16.msra.mxu0 0
    %296 = vmatprep.subr.bf16.mxu0 0
    %297 = vmatpush2.bf16.msra.mxu0 0
    %298 = vmatprep.subr.bf16.mxu0 0
    %299 = vmatpush2.bf16.msra.mxu0 0
    %300 = vmatprep.subr.bf16.mxu0 0
    %301 = vmatpush2.bf16.msra.mxu0 0
    %302 = vmatprep.subr.bf16.mxu0 0
    %303 = vmatpush2.bf16.msra.mxu0 0
    %304 = vmatprep.subr.bf16.mxu0 0
    %305 = vmatpush2.bf16.msra.mxu0 0
    %306 = vmatprep.subr.bf16.mxu0 0
    %307 = vmatpush2.bf16.msra.mxu0 0
    %308 = vmatprep.mubr.bf16.mxu0 0
    %309 = vmatmul.mubr.bf16.gmra.mxu0 %v200
    %v310 = vpop.f32.mrf.mxu0
    %v311 = vadd.f32 %v227, %v310
    %v312 = vpop.f32.mrf.mxu0
    %v313 = vpop.f32.mrf.mxu0
    %v314 = vadd.f32 %v227, %v313
    %v315 = vpop.f32.mrf.mxu0
    %316 = vmatprep.mubr.bf16.mxu0 0
    %317 = vmatmul.mubr.bf16.gmra.mxu0 %v201
    %v318 = vpop.f32.mrf.mxu0
    %v319 = vadd.f32 %v227, %v318
    %v320 = vpop.f32.mrf.mxu0
    %v321 = vpop.f32.mrf.mxu0
    %v322 = vadd.f32 %v227, %v321
    %v323 = vpop.f32.mrf.mxu0
    %324 = vmatprep.mubr.bf16.mxu0 0
    %325 = vmatmul.mubr.bf16.gmra.mxu0 %v202
    %v326 = vpop.f32.mrf.mxu0
    %v327 = vadd.f32 %v227, %v326
    %v328 = vpop.f32.mrf.mxu0
    %v329 = vpop.f32.mrf.mxu0
    %v330 = vadd.f32 %v227, %v329
    %v331 = vpop.f32.mrf.mxu0
    %332 = vmatprep.mubr.bf16.mxu0 0
    %333 = vmatmul.mubr.bf16.gmra.mxu0 %v203
    %v334 = vpop.f32.mrf.mxu0
    %v335 = vadd.f32 %v227, %v334
    %v336 = vpop.f32.mrf.mxu0
    %v337 = vpop.f32.mrf.mxu0
    %v338 = vadd.f32 %v227, %v337
    %v339 = vpop.f32.mrf.mxu0
    %340 = vmatprep.mubr.bf16.mxu0 0
    %341 = vmatmul.mubr.bf16.gmra.mxu0 %v204
    %v342 = vpop.f32.mrf.mxu0
    %v343 = vadd.f32 %v227, %v342
    %v344 = vpop.f32.mrf.mxu0
    %v345 = vpop.f32.mrf.mxu0
    %v346 = vadd.f32 %v227, %v345
    %v347 = vpop.f32.mrf.mxu0
    %348 = vmatprep.mubr.bf16.mxu0 0
    %349 = vmatmul.mubr.bf16.gmra.mxu0 %v205
    %v350 = vpop.f32.mrf.mxu0
    %v351 = vadd.f32 %v227, %v350
    %v352 = vpop.f32.mrf.mxu0
    %v353 = vpop.f32.mrf.mxu0
    %v354 = vadd.f32 %v227, %v353
    %v355 = vpop.f32.mrf.mxu0
    %356 = vmatprep.mubr.bf16.mxu0 0
    %357 = vmatmul.mubr.bf16.gmra.mxu0 %v206
    %v358 = vpop.f32.mrf.mxu0
    %v359 = vadd.f32 %v227, %v358
    %v360 = vpop.f32.mrf.mxu0
    %v361 = vpop.f32.mrf.mxu0
    %v362 = vadd.f32 %v227, %v361
    %v363 = vpop.f32.mrf.mxu0
    %364 = vmatprep.mubr.bf16.mxu0 0
    %365 = vmatmul.mubr.bf16.gmra.mxu0 %v207
    %v366 = vpop.f32.mrf.mxu0
    %v367 = vadd.f32 %v227, %v366
    %v368 = vpop.f32.mrf.mxu0
    %v369 = vpop.f32.mrf.mxu0
    %v370 = vadd.f32 %v227, %v369
    %v371 = vpop.f32.mrf.mxu0
    %372 = vdwg.mxu0
    %v373 = vmax.f32 %v311, 0.0
    %v374 = vmax.f32 %v314, 0.0
    %v375 = vmax.f32 %v319, 0.0
    %v376 = vmax.f32 %v322, 0.0
    %v377 = vmax.f32 %v327, 0.0
    %v378 = vmax.f32 %v330, 0.0
    %v379 = vmax.f32 %v335, 0.0
    %v380 = vmax.f32 %v338, 0.0
    %v381 = vmax.f32 %v343, 0.0
    %v382 = vmax.f32 %v346, 0.0
    %v383 = vmax.f32 %v351, 0.0
    %v384 = vmax.f32 %v354, 0.0
    %v385 = vmax.f32 %v359, 0.0
    %v386 = vmax.f32 %v362, 0.0
    %v387 = vmax.f32 %v367, 0.0
    %v388 = vmax.f32 %v370, 0.0
    %v389 = vpack.c.bf16 %v374, %v373
    %v390 = vpack.c.bf16 %v376, %v375
    %v391 = vpack.c.bf16 %v378, %v377
    %v392 = vpack.c.bf16 %v380, %v379
    %v393 = vpack.c.bf16 %v382, %v381
    %v394 = vpack.c.bf16 %v384, %v383
    %v395 = vpack.c.bf16 %v386, %v385
    %v396 = vpack.c.bf16 %v388, %v387
    %v397 = vld [vmem:[%s3] sm:$0xf]
    %v398 = vld [vmem:[%s3 + $0x4] sm:$0xf]
    %v399 = vld [vmem:[%s3 + $0x8] sm:$0xf]
    %v400 = vld [vmem:[%s3 + $0xc] sm:$0xf]
    %v401 = vld [vmem:[%s3 + $0x10] sm:$0xf]
    %v402 = vld [vmem:[%s3 + $0x14] sm:$0xf]
    %v403 = vld [vmem:[%s3 + $0x18] sm:$0xf]
    %v404 = vld [vmem:[%s3 + $0x1c] sm:$0xf]
    %v405 = vld [vmem:[%s3 + $0x20] sm:$0xf]
    %v406 = vld [vmem:[%s3 + $0x24] sm:$0xf]
    %v407 = vld [vmem:[%s3 + $0x28] sm:$0xf]
    %v408 = vld [vmem:[%s3 + $0x2c] sm:$0xf]
    %v409 = vld [vmem:[%s3 + $0x30] sm:$0xf]
    %v410 = vld [vmem:[%s3 + $0x34] sm:$0xf]
    %v411 = vld [vmem:[%s3 + $0x38] sm:$0xf]
    %v412 = vld [vmem:[%s3 + $0x3c] sm:$0xf]
    %v413 = vlaneseq
    %v414 = vshrl.u32 %v413, 7
    %v415 = vsub.s32 0, %v414
    %v416 = vrot.slane %v49, %v415
    %v433 = vunpack.c.l.b16 %v397
    %v434 = vunpack.c.l.b16 %v398
    %v435 = vunpack.c.l.b16 %v399
    %v436 = vunpack.c.l.b16 %v400
    %v437 = vunpack.c.l.b16 %v401
    %v438 = vunpack.c.l.b16 %v402
    %v439 = vunpack.c.l.b16 %v403
    %v440 = vunpack.c.l.b16 %v404
    %v441 = vunpack.c.l.b16 %v405
    %v442 = vunpack.c.l.b16 %v406
    %v443 = vunpack.c.l.b16 %v407
    %v444 = vunpack.c.l.b16 %v408
    %v445 = vunpack.c.l.b16 %v409
    %v446 = vunpack.c.l.b16 %v410
    %v447 = vunpack.c.l.b16 %v411
    %v448 = vunpack.c.l.b16 %v412
    %v449 = vpack.c.b16 %v434, %v433
    %v450 = vpack.c.b16 %v436, %v435
    %v451 = vpack.c.b16 %v438, %v437
    %v452 = vpack.c.b16 %v440, %v439
    %v453 = vpack.c.b16 %v442, %v441
    %v454 = vpack.c.b16 %v444, %v443
    %v455 = vpack.c.b16 %v446, %v445
    %v456 = vpack.c.b16 %v448, %v447
    %465 = vmatprep.subr.bf16.mxu0 0
    %466 = vmatpush1.bf16.msra.mxu0 %v456
    %467 = vmatprep.subr.bf16.mxu0 0
    %468 = vmatpush1.bf16.msra.mxu0 %v455
    %469 = vmatprep.subr.bf16.mxu0 0
    %470 = vmatpush1.bf16.msra.mxu0 %v454
    %471 = vmatprep.subr.bf16.mxu0 0
    %472 = vmatpush1.bf16.msra.mxu0 %v453
    %473 = vmatprep.subr.bf16.mxu0 0
    %474 = vmatpush1.bf16.msra.mxu0 %v452
    %475 = vmatprep.subr.bf16.mxu0 0
    %476 = vmatpush1.bf16.msra.mxu0 %v451
    %477 = vmatprep.subr.bf16.mxu0 0
    %478 = vmatpush1.bf16.msra.mxu0 %v450
    %479 = vmatprep.subr.bf16.mxu0 0
    %480 = vmatpush1.bf16.msra.mxu0 %v449
    %481 = vmatprep.subr.bf16.mxu0 0
    %482 = vmatpush2.bf16.msra.mxu0 0
    %483 = vmatprep.subr.bf16.mxu0 0
    %484 = vmatpush2.bf16.msra.mxu0 0
    %485 = vmatprep.subr.bf16.mxu0 0
    %486 = vmatpush2.bf16.msra.mxu0 0
    %487 = vmatprep.subr.bf16.mxu0 0
    %488 = vmatpush2.bf16.msra.mxu0 0
    %489 = vmatprep.subr.bf16.mxu0 0
    %490 = vmatpush2.bf16.msra.mxu0 0
    %491 = vmatprep.subr.bf16.mxu0 0
    %492 = vmatpush2.bf16.msra.mxu0 0
    %493 = vmatprep.subr.bf16.mxu0 0
    %494 = vmatpush2.bf16.msra.mxu0 0
    %495 = vmatprep.subr.bf16.mxu0 0
    %496 = vmatpush2.bf16.msra.mxu0 0
    %497 = vmatprep.mubr.bf16.mxu0 0
    %498 = vmatmul.mubr.bf16.gmra.mxu0 %v389
    %v499 = vpop.f32.mrf.mxu0
    %v500 = vadd.f32 %v416, %v499
    %v501 = vpop.f32.mrf.mxu0
    %v502 = vpop.f32.mrf.mxu0
    %v503 = vadd.f32 %v416, %v502
    %v504 = vpop.f32.mrf.mxu0
    %505 = vmatprep.mubr.bf16.mxu0 0
    %506 = vmatmul.mubr.bf16.gmra.mxu0 %v390
    %v507 = vpop.f32.mrf.mxu0
    %v508 = vadd.f32 %v416, %v507
    %v509 = vpop.f32.mrf.mxu0
    %v510 = vpop.f32.mrf.mxu0
    %v511 = vadd.f32 %v416, %v510
    %v512 = vpop.f32.mrf.mxu0
    %513 = vmatprep.mubr.bf16.mxu0 0
    %514 = vmatmul.mubr.bf16.gmra.mxu0 %v391
    %v515 = vpop.f32.mrf.mxu0
    %v516 = vadd.f32 %v416, %v515
    %v517 = vpop.f32.mrf.mxu0
    %v518 = vpop.f32.mrf.mxu0
    %v519 = vadd.f32 %v416, %v518
    %v520 = vpop.f32.mrf.mxu0
    %521 = vmatprep.mubr.bf16.mxu0 0
    %522 = vmatmul.mubr.bf16.gmra.mxu0 %v392
    %v523 = vpop.f32.mrf.mxu0
    %v524 = vadd.f32 %v416, %v523
    %v525 = vpop.f32.mrf.mxu0
    %v526 = vpop.f32.mrf.mxu0
    %v527 = vadd.f32 %v416, %v526
    %v528 = vpop.f32.mrf.mxu0
    %529 = vmatprep.mubr.bf16.mxu0 0
    %530 = vmatmul.mubr.bf16.gmra.mxu0 %v393
    %v531 = vpop.f32.mrf.mxu0
    %v532 = vadd.f32 %v416, %v531
    %v533 = vpop.f32.mrf.mxu0
    %v534 = vpop.f32.mrf.mxu0
    %v535 = vadd.f32 %v416, %v534
    %v536 = vpop.f32.mrf.mxu0
    %537 = vmatprep.mubr.bf16.mxu0 0
    %538 = vmatmul.mubr.bf16.gmra.mxu0 %v394
    %v539 = vpop.f32.mrf.mxu0
    %v540 = vadd.f32 %v416, %v539
    %v541 = vpop.f32.mrf.mxu0
    %v542 = vpop.f32.mrf.mxu0
    %v543 = vadd.f32 %v416, %v542
    %v544 = vpop.f32.mrf.mxu0
    %545 = vmatprep.mubr.bf16.mxu0 0
    %546 = vmatmul.mubr.bf16.gmra.mxu0 %v395
    %v547 = vpop.f32.mrf.mxu0
    %v548 = vadd.f32 %v416, %v547
    %v549 = vpop.f32.mrf.mxu0
    %v550 = vpop.f32.mrf.mxu0
    %v551 = vadd.f32 %v416, %v550
    %v552 = vpop.f32.mrf.mxu0
    %553 = vmatprep.mubr.bf16.mxu0 0
    %554 = vmatmul.mubr.bf16.gmra.mxu0 %v396
    %v555 = vpop.f32.mrf.mxu0
    %v556 = vadd.f32 %v416, %v555
    %v557 = vpop.f32.mrf.mxu0
    %v558 = vpop.f32.mrf.mxu0
    %v559 = vadd.f32 %v416, %v558
    %v560 = vpop.f32.mrf.mxu0
    %561 = vdwg.mxu0
    %562 = vmax.xlane.f32.xlu0 %v500
    %v563 = vpop.xlane.xlu0 %562
    %564 = vmax.xlane.f32.xlu0 %v503
    %v565 = vpop.xlane.xlu0 %564
    %566 = vmax.xlane.f32.xlu0 %v508
    %v567 = vpop.xlane.xlu0 %566
    %568 = vmax.xlane.f32.xlu0 %v511
    %v569 = vpop.xlane.xlu0 %568
    %570 = vmax.xlane.f32.xlu0 %v516
    %v571 = vpop.xlane.xlu0 %570
    %572 = vmax.xlane.f32.xlu0 %v519
    %v573 = vpop.xlane.xlu0 %572
    %574 = vmax.xlane.f32.xlu0 %v524
    %v575 = vpop.xlane.xlu0 %574
    %576 = vmax.xlane.f32.xlu0 %v527
    %v577 = vpop.xlane.xlu0 %576
    %578 = vmax.xlane.f32.xlu0 %v532
    %v579 = vpop.xlane.xlu0 %578
    %580 = vmax.xlane.f32.xlu0 %v535
    %v581 = vpop.xlane.xlu0 %580
    %582 = vmax.xlane.f32.xlu0 %v540
    %v583 = vpop.xlane.xlu0 %582
    %584 = vmax.xlane.f32.xlu0 %v543
    %v585 = vpop.xlane.xlu0 %584
    %586 = vmax.xlane.f32.xlu0 %v548
    %v587 = vpop.xlane.xlu0 %586
    %588 = vmax.xlane.f32.xlu0 %v551
    %v589 = vpop.xlane.xlu0 %588
    %590 = vmax.xlane.f32.xlu0 %v556
    %v591 = vpop.xlane.xlu0 %590
    %592 = vmax.xlane.f32.xlu0 %v559
    %v593 = vpop.xlane.xlu0 %592
    %v594 = vsub.f32 %v500, %v563
    %v595 = vsub.f32 %v503, %v565
    %v596 = vsub.f32 %v508, %v567
    %v597 = vsub.f32 %v511, %v569
    %v598 = vsub.f32 %v516, %v571
    %v599 = vsub.f32 %v519, %v573
    %v600 = vsub.f32 %v524, %v575
    %v601 = vsub.f32 %v527, %v577
    %v602 = vsub.f32 %v532, %v579
    %v603 = vsub.f32 %v535, %v581
    %v604 = vsub.f32 %v540, %v583
    %v605 = vsub.f32 %v543, %v585
    %v606 = vsub.f32 %v548, %v587
    %v607 = vsub.f32 %v551, %v589
    %v608 = vsub.f32 %v556, %v591
    %v609 = vsub.f32 %v559, %v593
    %v610 = vmul.f32 %v594, 1.442695
    %v611 = vpow.pop %v610
    %v612 = vmul.f32 %v595, 1.442695
    %v613 = vpow.pop %v612
    %v614 = vmul.f32 %v596, 1.442695
    %v615 = vpow.pop %v614
    %v616 = vmul.f32 %v597, 1.442695
    %v617 = vpow.pop %v616
    %v618 = vmul.f32 %v598, 1.442695
    %v619 = vpow.pop %v618
    %v620 = vmul.f32 %v599, 1.442695
    %v621 = vpow.pop %v620
    %v622 = vmul.f32 %v600, 1.442695
    %v623 = vpow.pop %v622
    %v624 = vmul.f32 %v601, 1.442695
    %v625 = vpow.pop %v624
    %v626 = vmul.f32 %v602, 1.442695
    %v627 = vpow.pop %v626
    %v628 = vmul.f32 %v603, 1.442695
    %v629 = vpow.pop %v628
    %v630 = vmul.f32 %v604, 1.442695
    %v631 = vpow.pop %v630
    %v632 = vmul.f32 %v605, 1.442695
    %v633 = vpow.pop %v632
    %v634 = vmul.f32 %v606, 1.442695
    %v635 = vpow.pop %v634
    %v636 = vmul.f32 %v607, 1.442695
    %v637 = vpow.pop %v636
    %v638 = vmul.f32 %v608, 1.442695
    %v639 = vpow.pop %v638
    %v640 = vmul.f32 %v609, 1.442695
    %v641 = vpow.pop %v640
    %v642 = vpack.c.bf16 %v613, %v611
    %v643 = vpack.c.bf16 %v617, %v615
    %v644 = vpack.c.bf16 %v621, %v619
    %v645 = vpack.c.bf16 %v625, %v623
    %v646 = vpack.c.bf16 %v629, %v627
    %v647 = vpack.c.bf16 %v633, %v631
    %v648 = vpack.c.bf16 %v637, %v635
    %v649 = vpack.c.bf16 %v641, %v639
    %650 = vmatprep.subr.bf16.mxu0 0
    %651 = vmatpush1.bf16.msra.mxu0 1065369472
    %652 = vmatprep.subr.bf16.mxu0 0
    %653 = vmatpush1.bf16.msra.mxu0 1065369472
    %654 = vmatprep.subr.bf16.mxu0 0
    %655 = vmatpush1.bf16.msra.mxu0 1065369472
    %656 = vmatprep.subr.bf16.mxu0 0
    %657 = vmatpush1.bf16.msra.mxu0 1065369472
    %658 = vmatprep.subr.bf16.mxu0 0
    %659 = vmatpush1.bf16.msra.mxu0 1065369472
    %660 = vmatprep.subr.bf16.mxu0 0
    %661 = vmatpush1.bf16.msra.mxu0 1065369472
    %662 = vmatprep.subr.bf16.mxu0 0
    %663 = vmatpush1.bf16.msra.mxu0 1065369472
    %664 = vmatprep.subr.bf16.mxu0 0
    %665 = vmatpush1.bf16.msra.mxu0 1065369472
    %666 = vmatprep.subr.bf16.mxu0 0
    %667 = vmatpush2.bf16.msra.mxu0 0
    %668 = vmatprep.subr.bf16.mxu0 0
    %669 = vmatpush2.bf16.msra.mxu0 0
    %670 = vmatprep.subr.bf16.mxu0 0
    %671 = vmatpush2.bf16.msra.mxu0 0
    %672 = vmatprep.subr.bf16.mxu0 0
    %673 = vmatpush2.bf16.msra.mxu0 0
    %674 = vmatprep.subr.bf16.mxu0 0
    %675 = vmatpush2.bf16.msra.mxu0 0
    %676 = vmatprep.subr.bf16.mxu0 0
    %677 = vmatpush2.bf16.msra.mxu0 0
    %678 = vmatprep.subr.bf16.mxu0 0
    %679 = vmatpush2.bf16.msra.mxu0 0
    %680 = vmatprep.subr.bf16.mxu0 0
    %681 = vmatpush2.bf16.msra.mxu0 0
    %682 = vmatprep.mubr.bf16.mxu0 0
    %683 = vmatmul.mubr.bf16.gmra.mxu0 %v642
    %v684 = vpop.f32.mrf.mxu0
    %v685 = vadd.f32 0.0, %v684
    %v686 = vpop.f32.mrf.mxu0
    %v687 = vpop.f32.mrf.mxu0
    %v688 = vadd.f32 0.0, %v687
    %v689 = vpop.f32.mrf.mxu0
    %690 = vmatprep.mubr.bf16.mxu0 0
    %691 = vmatmul.mubr.bf16.gmra.mxu0 %v643
    %v692 = vpop.f32.mrf.mxu0
    %v693 = vadd.f32 0.0, %v692
    %v694 = vpop.f32.mrf.mxu0
    %v695 = vpop.f32.mrf.mxu0
    %v696 = vadd.f32 0.0, %v695
    %v697 = vpop.f32.mrf.mxu0
    %698 = vmatprep.mubr.bf16.mxu0 0
    %699 = vmatmul.mubr.bf16.gmra.mxu0 %v644
    %v700 = vpop.f32.mrf.mxu0
    %v701 = vadd.f32 0.0, %v700
    %v702 = vpop.f32.mrf.mxu0
    %v703 = vpop.f32.mrf.mxu0
    %v704 = vadd.f32 0.0, %v703
    %v705 = vpop.f32.mrf.mxu0
    %706 = vmatprep.mubr.bf16.mxu0 0
    %707 = vmatmul.mubr.bf16.gmra.mxu0 %v645
    %v708 = vpop.f32.mrf.mxu0
    %v709 = vadd.f32 0.0, %v708
    %v710 = vpop.f32.mrf.mxu0
    %v711 = vpop.f32.mrf.mxu0
    %v712 = vadd.f32 0.0, %v711
    %v713 = vpop.f32.mrf.mxu0
    %714 = vmatprep.mubr.bf16.mxu0 0
    %715 = vmatmul.mubr.bf16.gmra.mxu0 %v646
    %v716 = vpop.f32.mrf.mxu0
    %v717 = vadd.f32 0.0, %v716
    %v718 = vpop.f32.mrf.mxu0
    %v719 = vpop.f32.mrf.mxu0
    %v720 = vadd.f32 0.0, %v719
    %v721 = vpop.f32.mrf.mxu0
    %722 = vmatprep.mubr.bf16.mxu0 0
    %723 = vmatmul.mubr.bf16.gmra.mxu0 %v647
    %v724 = vpop.f32.mrf.mxu0
    %v725 = vadd.f32 0.0, %v724
    %v726 = vpop.f32.mrf.mxu0
    %v727 = vpop.f32.mrf.mxu0
    %v728 = vadd.f32 0.0, %v727
    %v729 = vpop.f32.mrf.mxu0
    %730 = vmatprep.mubr.bf16.mxu0 0
    %731 = vmatmul.mubr.bf16.gmra.mxu0 %v648
    %v732 = vpop.f32.mrf.mxu0
    %v733 = vadd.f32 0.0, %v732
    %v734 = vpop.f32.mrf.mxu0
    %v735 = vpop.f32.mrf.mxu0
    %v736 = vadd.f32 0.0, %v735
    %v737 = vpop.f32.mrf.mxu0
    %738 = vmatprep.mubr.bf16.mxu0 0
    %739 = vmatmul.mubr.bf16.gmra.mxu0 %v649
    %v740 = vpop.f32.mrf.mxu0
    %v741 = vadd.f32 0.0, %v740
    %v742 = vpop.f32.mrf.mxu0
    %v743 = vpop.f32.mrf.mxu0
    %v744 = vadd.f32 0.0, %v743
    %v745 = vpop.f32.mrf.mxu0
    %746 = vdwg.mxu0
    %v747 = vlog2.pop %v685
    %v748 = vmul.f32 %v747, 0.6931472
    %v749 = vlog2.pop %v688
    %v750 = vmul.f32 %v749, 0.6931472
    %v751 = vlog2.pop %v693
    %v752 = vmul.f32 %v751, 0.6931472
    %v753 = vlog2.pop %v696
    %v754 = vmul.f32 %v753, 0.6931472
    %v755 = vlog2.pop %v701
    %v756 = vmul.f32 %v755, 0.6931472
    %v757 = vlog2.pop %v704
    %v758 = vmul.f32 %v757, 0.6931472
    %v759 = vlog2.pop %v709
    %v760 = vmul.f32 %v759, 0.6931472
    %v761 = vlog2.pop %v712
    %v762 = vmul.f32 %v761, 0.6931472
    %v763 = vlog2.pop %v717
    %v764 = vmul.f32 %v763, 0.6931472
    %v765 = vlog2.pop %v720
    %v766 = vmul.f32 %v765, 0.6931472
    %v767 = vlog2.pop %v725
    %v768 = vmul.f32 %v767, 0.6931472
    %v769 = vlog2.pop %v728
    %v770 = vmul.f32 %v769, 0.6931472
    %v771 = vlog2.pop %v733
    %v772 = vmul.f32 %v771, 0.6931472
    %v773 = vlog2.pop %v736
    %v774 = vmul.f32 %v773, 0.6931472
    %v775 = vlog2.pop %v741
    %v776 = vmul.f32 %v775, 0.6931472
    %v777 = vlog2.pop %v744
    %v778 = vmul.f32 %v777, 0.6931472
    %780 = vset.pattern.permute.xlu0 0
    %781 = vperm.xlu0 %780, %v748
    %v782 = vpop.permute.xlu0 %781
    %785 = vset.pattern.permute.xlu0 0
    %786 = vperm.xlu0 %785, %v750
    %v787 = vpop.permute.xlu0 %786
    %790 = vset.pattern.permute.xlu0 0
    %791 = vperm.xlu0 %790, %v752
    %v792 = vpop.permute.xlu0 %791
    %795 = vset.pattern.permute.xlu0 0
    %796 = vperm.xlu0 %795, %v754
    %v797 = vpop.permute.xlu0 %796
    %800 = vset.pattern.permute.xlu0 0
    %801 = vperm.xlu0 %800, %v756
    %v802 = vpop.permute.xlu0 %801
    %805 = vset.pattern.permute.xlu0 0
    %806 = vperm.xlu0 %805, %v758
    %v807 = vpop.permute.xlu0 %806
    %810 = vset.pattern.permute.xlu0 0
    %811 = vperm.xlu0 %810, %v760
    %v812 = vpop.permute.xlu0 %811
    %815 = vset.pattern.permute.xlu0 0
    %816 = vperm.xlu0 %815, %v762
    %v817 = vpop.permute.xlu0 %816
    %820 = vset.pattern.permute.xlu0 0
    %821 = vperm.xlu0 %820, %v764
    %v822 = vpop.permute.xlu0 %821
    %825 = vset.pattern.permute.xlu0 0
    %826 = vperm.xlu0 %825, %v766
    %v827 = vpop.permute.xlu0 %826
    %830 = vset.pattern.permute.xlu0 0
    %831 = vperm.xlu0 %830, %v768
    %v832 = vpop.permute.xlu0 %831
    %835 = vset.pattern.permute.xlu0 0
    %836 = vperm.xlu0 %835, %v770
    %v837 = vpop.permute.xlu0 %836
    %840 = vset.pattern.permute.xlu0 0
    %841 = vperm.xlu0 %840, %v772
    %v842 = vpop.permute.xlu0 %841
    %845 = vset.pattern.permute.xlu0 0
    %846 = vperm.xlu0 %845, %v774
    %v847 = vpop.permute.xlu0 %846
    %850 = vset.pattern.permute.xlu0 0
    %851 = vperm.xlu0 %850, %v776
    %v852 = vpop.permute.xlu0 %851
    %855 = vset.pattern.permute.xlu0 0
    %856 = vperm.xlu0 %855, %v778
    %v857 = vpop.permute.xlu0 %856
    %v859 = vsub.f32 %v594, %v782
    %v860 = vsub.f32 %v595, %v787
    %v861 = vsub.f32 %v596, %v792
    %v862 = vsub.f32 %v597, %v797
    %v863 = vsub.f32 %v598, %v802
    %v864 = vsub.f32 %v599, %v807
    %v865 = vsub.f32 %v600, %v812
    %v866 = vsub.f32 %v601, %v817
    %v867 = vsub.f32 %v602, %v822
    %v868 = vsub.f32 %v603, %v827
    %v869 = vsub.f32 %v604, %v832
    %v870 = vsub.f32 %v605, %v837
    %v871 = vsub.f32 %v606, %v842
    %v872 = vsub.f32 %v607, %v847
    %v873 = vsub.f32 %v608, %v852
    %v874 = vsub.f32 %v609, %v857
    %v875 = vpack.c.bf16 %v860, %v859
    %v876 = vpack.c.bf16 %v862, %v861
    %v877 = vpack.c.bf16 %v864, %v863
    %v878 = vpack.c.bf16 %v866, %v865
    %v879 = vpack.c.bf16 %v868, %v867
    %v880 = vpack.c.bf16 %v870, %v869
    %v881 = vpack.c.bf16 %v872, %v871
    %v882 = vpack.c.bf16 %v874, %v873
    %v891 = vunpack.c.l.b16 %v875
    %v892 = vunpack.c.h.b16 %v875
    %v893 = vunpack.c.l.b16 %v876
    %v894 = vunpack.c.h.b16 %v876
    %v895 = vunpack.c.l.b16 %v877
    %v896 = vunpack.c.h.b16 %v877
    %v897 = vunpack.c.l.b16 %v878
    %v898 = vunpack.c.h.b16 %v878
    %v899 = vunpack.c.l.b16 %v879
    %v900 = vunpack.c.h.b16 %v879
    %v901 = vunpack.c.l.b16 %v880
    %v902 = vunpack.c.h.b16 %v880
    %v903 = vunpack.c.l.b16 %v881
    %v904 = vunpack.c.h.b16 %v881
    %v905 = vunpack.c.l.b16 %v882
    %v906 = vunpack.c.h.b16 %v882
    %v907 = vpack.c.b16 %v891, %v891
    %v908 = vpack.c.b16 %v892, %v892
    %v909 = vpack.c.b16 %v893, %v893
    %v910 = vpack.c.b16 %v894, %v894
    %v911 = vpack.c.b16 %v895, %v895
    %v912 = vpack.c.b16 %v896, %v896
    %v913 = vpack.c.b16 %v897, %v897
    %v914 = vpack.c.b16 %v898, %v898
    %v915 = vpack.c.b16 %v899, %v899
    %v916 = vpack.c.b16 %v900, %v900
    %v917 = vpack.c.b16 %v901, %v901
    %v918 = vpack.c.b16 %v902, %v902
    %v919 = vpack.c.b16 %v903, %v903
    %v920 = vpack.c.b16 %v904, %v904
    %v921 = vpack.c.b16 %v905, %v905
    %v922 = vpack.c.b16 %v906, %v906
    %939 = vst [vmem:[#allocation2] sm:$0xf] %v907
    %940 = vst [vmem:[#allocation2 + $0x4] sm:$0xf] %v908
    %941 = vst [vmem:[#allocation2 + $0x8] sm:$0xf] %v909
    %942 = vst [vmem:[#allocation2 + $0xc] sm:$0xf] %v910
    %943 = vst [vmem:[#allocation2 + $0x10] sm:$0xf] %v911
    %944 = vst [vmem:[#allocation2 + $0x14] sm:$0xf] %v912
    %945 = vst [vmem:[#allocation2 + $0x18] sm:$0xf] %v913
    %946 = vst [vmem:[#allocation2 + $0x1c] sm:$0xf] %v914
    %947 = vst [vmem:[#allocation2 + $0x20] sm:$0xf] %v915
    %948 = vst [vmem:[#allocation2 + $0x24] sm:$0xf] %v916
    %949 = vst [vmem:[#allocation2 + $0x28] sm:$0xf] %v917
    %950 = vst [vmem:[#allocation2 + $0x2c] sm:$0xf] %v918
    %951 = vst [vmem:[#allocation2 + $0x30] sm:$0xf] %v919
    %952 = vst [vmem:[#allocation2 + $0x34] sm:$0xf] %v920
    %953 = vst [vmem:[#allocation2 + $0x38] sm:$0xf] %v921
    %954 = vst [vmem:[#allocation2 + $0x3c] sm:$0xf] %v922
    // Predicated region
    $region22: #{tpu_custom_call.1} parent=1 // pred_check
      _
    $region23: #{tpu_custom_call.1} parent=1 // pred_check_branch
      %956 = sbr.rel (0) target = $region25
    $region24: #{tpu_custom_call.1} parent=1 // pred_region
      %s958 = ssub.s32 1024, 1024
      %959 = vsyncadd [#allocation3], %s958
      %s960 = sshll.u32 [#allocation2], 4
      %s961 = int_to_ptr.vmem [resolvable:$true] %s960
      %966 = dma.vmem_to_hbm [thread:$0]  %s961, 1024, %s5, [#allocation3], 64, 64, 4
    $region25: #{tpu_custom_call.1} parent=1 // pred_fallthru
      _
    // Predicated region
    $region26: #{tpu_custom_call.1} parent=1 // pred_check
      _
    $region27: #{tpu_custom_call.1} parent=1 // pred_check_branch
      %968 = sbr.rel (0) target = $region29
    $region28: #{tpu_custom_call.1} parent=1 // pred_region
      %969 = dma.done [#allocation3], 1024
    $region29: #{tpu_custom_call.1} parent=1 // pred_fallthru
      _
    %970 = vsyncpa [#allocation3], 1

</llo_original>
